<compile_context>
chip_gen: v6e
topology: v6e:2x2x1
jax: 0.10.0
libtpu: 0.0.40
codegen_flags: <defaults>
</compile_context>

<pallas_src>
import functools

import jax
import jax.numpy as jnp
from jax.experimental import pallas as pl
from jax.experimental.pallas import tpu as pltpu

_LANE = 128                              # vreg lane width
_SUB_F32 = 8                             # f32 sublanes per vreg
_DEFAULT_BLOCK_BYTES = 4 * 1024 * 1024   # per-input, per-buffer VMEM budget
_VMEM_LIMIT_BYTES = 32 * 1024 * 1024     # 2 inputs x 2 bufs x 4 MiB = 16 MiB << 32 MiB


def _sublane_multiple(dtype) -> int:
    # sublane tiling requirement: 8 for 32-bit, 16 for 16-bit, 32 for 8-bit
    return max(_SUB_F32, 32 // jnp.dtype(dtype).itemsize)


def _round_up(x, m):
    return ((x + m - 1) // m) * m


def _detect_num_tensorcores() -> int:
    """Best-effort TensorCores-per-chip (2 on v7x / megacore chips, else 1)."""
    get_info = getattr(pltpu, "get_tpu_info", None)
    if get_info is None:
        return 1
    try:
        info = get_info()
    except Exception:
        return 1
    for name in ("num_cores", "core_count", "num_tensorcores",
                 "tensorcore_count", "cores_per_chip"):
        v = getattr(info, name, None)
        if v is None:
            continue
        try:
            v = int(v)
        except Exception:
            continue
        if 1 <= v <= 8:
            return v
    return 1


def _rmse_kernel(yp_ref, yt_ref, out_ref, acc_ref, *,
                 rows, tr, spc, num_cores, needs_mask):
    """Accumulate per-lane partial sums of (yp - yt)^2; finalize on last step."""
    if num_cores > 1:
        c = pl.program_id(0)     # core-split axis (CORE_PARALLEL)
        j = pl.program_id(1)     # reduction axis ("arbitrary")
    else:
        c = 0
        j = pl.program_id(0)     # reduction axis only

    @pl.when(j == 0)
    def _():
        acc_ref[...] = jnp.zeros_like(acc_ref)

    def partial_sums(mask_start):
        d = yp_ref[...].astype(jnp.float32) - yt_ref[...].astype(jnp.float32)
        sq = d * d
        if mask_start is not None:
            row = jax.lax.broadcasted_iota(jnp.int32, sq.shape, 0) + mask_start
            sq = jnp.where(row < rows, sq, 0.0)
        # Reduce over the row-block axis: VPU adds + a cheap sublane reduce.
        return sq.sum(axis=0, keepdims=True)            # (1, 128)

    if needs_mask:
        b = c * spc + j                   # un-clamped global block index
        is_tail = (b + 1) * tr > rows     # overhanging or clamped-duplicate block

        @pl.when(jnp.logical_not(is_tail))
        def _():
            acc_ref[...] += partial_sums(None)

        @pl.when(is_tail)
        def _():
            acc_ref[...] += partial_sums(b * tr)
    else:
        acc_ref[...] += partial_sums(None)

    # In-kernel finalize: write this core's (1,128) partial-sum row once.
    @pl.when(j == spc - 1)
    def _():
        out_ref[...] = acc_ref[...][None]


def rmse_loss(y_pred, y_true, *, block_bytes=_DEFAULT_BLOCK_BYTES, num_cores=None):
    """sqrt(mean((y_pred - y_true)**2)), forward-equivalent to RMSELoss."""
    assert y_pred.shape == y_true.shape, "MSELoss (default) expects matching shapes"
    n = y_pred.size
    assert n > 0

    flat_p = y_pred.reshape(-1)
    flat_t = y_true.reshape(-1)

    sub_req = max(_sublane_multiple(y_pred.dtype), _sublane_multiple(y_true.dtype))
    itemsize = max(jnp.dtype(y_pred.dtype).itemsize, jnp.dtype(y_true.dtype).itemsize)

    rows = pl.cdiv(n, _LANE)
    if rows * _LANE != n:
        # Ragged size (rare for this module): single zero-pad of both inputs to a
        # whole (sub_req, 128)-row count.  Zeros add nothing to the sum of squares.
        # TODO(synk): remove this pad copy for large ragged inputs by streaming
        # flat 1D blocks and masking with a flat-index iota (< n) in-kernel.
        rows = _round_up(rows, sub_req)
        pad = rows * _LANE - n
        flat_p = jnp.pad(flat_p, (0, pad))
        flat_t = jnp.pad(flat_t, (0, pad))

    main_p = flat_p.reshape(rows, _LANE)   # free reshape when n % 128 == 0
    main_t = flat_t.reshape(rows, _LANE)

    # Byte-sized tile: ~block_bytes of each input per step regardless of dtype.
    tr_budget = max(sub_req, (block_bytes // (_LANE * itemsize)) // sub_req * sub_req)
    if rows <= tr_budget:
        tr = rows          # single block == full array dims (always legal, no mask)
    else:
        tr = tr_budget     # multiple of sub_req; partial last block masked in-kernel

    total_steps = pl.cdiv(rows, tr)

    if num_cores is None:
        num_cores = _detect_num_tensorcores()
    num_cores = max(1, min(int(num_cores), 2))
    if total_steps < 2 * num_cores:
        num_cores = 1      # not enough steps to be worth a core split

    spc = pl.cdiv(total_steps, num_cores)          # reduction steps per core
    needs_clamp = num_cores * spc > total_steps    # odd step count across cores
    needs_mask = (rows % tr != 0) or needs_clamp

    if num_cores > 1:
        grid = (num_cores, spc)
        if needs_clamp:
            def in_map(c, j):
                # Clamp to a valid block; the duplicate block is fully masked
                # in-kernel (all its rows are >= `rows`), so it contributes 0.
                return (jnp.minimum(c * spc + j, total_steps - 1), 0)
        else:
            def in_map(c, j):
                return (c * spc + j, 0)
        out_map = lambda c, j: (c, 0, 0)
        # Real 2-TC sharding on multi-core chips; falls back to "parallel" if the
        # constant is unavailable in this JAX version.
        dim_sem = (getattr(pltpu, "CORE_PARALLEL", "parallel"), "arbitrary")
    else:
        grid = (spc,)
        in_map = lambda j: (j, 0)
        out_map = lambda j: (0, 0, 0)
        dim_sem = ("arbitrary",)

    kernel = functools.partial(
        _rmse_kernel, rows=rows, tr=tr, spc=spc,
        num_cores=num_cores, needs_mask=needs_mask)

    partials = pl.pallas_call(
        kernel,
        out_shape=jax.ShapeDtypeStruct((num_cores, 1, _LANE), jnp.float32),
        grid=grid,
        in_specs=[
            pl.BlockSpec((tr, _LANE), in_map),
            pl.BlockSpec((tr, _LANE), in_map),
        ],
        out_specs=pl.BlockSpec((1, 1, _LANE), out_map),
        scratch_shapes=[pltpu.VMEM((1, _LANE), jnp.float32)],
        compiler_params=pltpu.CompilerParams(
            dimension_semantics=dim_sem,
            vmem_limit_bytes=_VMEM_LIMIT_BYTES,
        ),
    )(main_p, main_t)

    total = jnp.sum(partials)
    return jnp.sqrt(total / jnp.float32(n))


if __name__ == "__main__":
    key = jax.random.PRNGKey(0)

    def ref_rmse(a, b):
        d = a.astype(jnp.float32) - b.astype(jnp.float32)
        return jnp.sqrt(jnp.mean(d * d))

    k1, k2, k3, k4, k5, k6, k7, k8, k9, k10 = jax.random.split(key, 10)

    # 1) FacesAE-style NCHW batch, f32 (n % 128 == 0, single block, no mask).
    yp = jax.random.normal(k1, (2, 4, 16, 16), dtype=jnp.float32)
    yt = jax.random.normal(k2, (2, 4, 16, 16), dtype=jnp.float32)
    loss = rmse_loss(yp, yt)
    jax.block_until_ready(loss)
    assert jnp.allclose(loss, ref_rmse(yp, yt), rtol=1e-5, atol=1e-6), (loss, ref_rmse(yp, yt))

    # 2) Native bf16 streaming (no wrapper upcast; byte-sized tiles keep bytes/step).
    ypb = jax.random.normal(k3, (2, 4, 16, 16), dtype=jnp.float32).astype(jnp.bfloat16)
    ytb = jax.random.normal(k4, (2, 4, 16, 16), dtype=jnp.float32).astype(jnp.bfloat16)
    lossb = rmse_loss(ypb, ytb)
    jax.block_until_ready(lossb)
    assert jnp.allclose(lossb, ref_rmse(ypb, ytb), rtol=1e-4, atol=1e-5)

    # 3) Multi-step reduction grid with a partial (masked) trailing block.
    ypm = jax.random.normal(k5, (10, 4, 32, 32), dtype=jnp.float32)
    ytm = jax.random.normal(k6, (10, 4, 32, 32), dtype=jnp.float32)
    lossm = rmse_loss(ypm, ytm, block_bytes=48 * _LANE * 4)   # 48-row tiles, 320 rows
    jax.block_until_ready(lossm)
    assert jnp.allclose(lossm, ref_rmse(ypm, ytm), rtol=1e-5, atol=1e-6)

    # 4) Ragged element count (zero-pad path; mean still divides by the true n).
    ypr = jax.random.normal(k7, (3, 3, 7, 11), dtype=jnp.float32)
    ytr = jax.random.normal(k8, (3, 3, 7, 11), dtype=jnp.float32)
    lossr = rmse_loss(ypr, ytr)
    jax.block_until_ready(lossr)
    assert jnp.allclose(lossr, ref_rmse(ypr, ytr), rtol=1e-5, atol=1e-6)

    # 5) n % 128 == 0 but row count not a multiple of 8 (full-array block path).
    yps = jax.random.normal(k9, (6, 256), dtype=jnp.float32)
    yts = jax.random.normal(k10, (6, 256), dtype=jnp.float32)
    losss = rmse_loss(yps, yts)
    jax.block_until_ready(losss)
    assert jnp.allclose(losss, ref_rmse(yps, yts), rtol=1e-5, atol=1e-6)

    print("KERNEL_OK")
</pallas_src>

<mosaic_0001>
module attributes {stable_mosaic.version = 11 : i64} {
  func.func @_rmse_kernel(%arg0: i32, %arg1: memref<16x128xf32, #tpu.memory_space<vmem>>, %arg2: memref<16x128xf32, #tpu.memory_space<vmem>>, %arg3: memref<1x1x128xf32, #tpu.memory_space<vmem>>, %arg4: memref<1x128xf32, #tpu.memory_space<vmem>>) attributes {dimension_semantics = [#tpu.dimension_semantics<arbitrary>], iteration_bounds = array<i64: 1>, scalar_prefetch = 0 : i64, scratch_operands = 1 : i64, tpu.core_type = #tpu.core_type<tc>, window_params = [{transform_indices = @transform_0, window_bounds = array<i64: 16, 128>}, {transform_indices = @transform_1, window_bounds = array<i64: 16, 128>}, {pipeline_mode = #tpu.pipeline_mode<synchronous>, transform_indices = @transform_2, window_bounds = array<i64: 1, 1, 128>}]} {
    %c0_i32 = arith.constant 0 : i32
    %0 = arith.cmpi eq, %arg0, %c0_i32 : i32
    %1 = arith.extui %0 : i1 to i32
    %c0_i32_0 = arith.constant 0 : i32
    %2 = arith.cmpi ne, %1, %c0_i32_0 : i32
    scf.if %2 {
      %cst_10 = arith.constant 0.000000e+00 : f32
      %15 = vector.broadcast %cst_10 : f32 to vector<1x128xf32>
      %c0_11 = arith.constant 0 : index
      %c0_12 = arith.constant 0 : index
      %16 = vector.load %arg4[%c0_11, %c0_12] : memref<1x128xf32, #tpu.memory_space<vmem>>, vector<1x128xf32>
      tpu.vector_store %arg4[%c0_11, %c0_12], %15 {strides = array<i32>} : memref<1x128xf32, #tpu.memory_space<vmem>>, vector<1x128xf32>,
    } else {
    }
    %c0 = arith.constant 0 : index
    %c0_1 = arith.constant 0 : index
    %3 = vector.load %arg4[%c0, %c0_1] : memref<1x128xf32, #tpu.memory_space<vmem>>, vector<1x128xf32>
    %c0_2 = arith.constant 0 : index
    %c0_3 = arith.constant 0 : index
    %4 = vector.load %arg1[%c0_2, %c0_3] : memref<16x128xf32, #tpu.memory_space<vmem>>, vector<16x128xf32>
    %c0_4 = arith.constant 0 : index
    %c0_5 = arith.constant 0 : index
    %5 = vector.load %arg2[%c0_4, %c0_5] : memref<16x128xf32, #tpu.memory_space<vmem>>, vector<16x128xf32>
    %6 = arith.subf %4, %5 : vector<16x128xf32>
    %7 = arith.mulf %6, %6 : vector<16x128xf32>
    %cst = arith.constant dense<0.000000e+00> : vector<128xf32>
    %8 = vector.multi_reduction <add>, %7, %cst [0] : vector<16x128xf32> to vector<128xf32>
    %9 = vector.shape_cast %8 : vector<128xf32> to vector<1x128xf32>
    %10 = arith.addf %3, %9 : vector<1x128xf32>
    %c0_6 = arith.constant 0 : index
    %c0_7 = arith.constant 0 : index
    %11 = vector.load %arg4[%c0_6, %c0_7] : memref<1x128xf32, #tpu.memory_space<vmem>>, vector<1x128xf32>
    tpu.vector_store %arg4[%c0_6, %c0_7], %10 {strides = array<i32>} : memref<1x128xf32, #tpu.memory_space<vmem>>, vector<1x128xf32>,
    %c0_i32_8 = arith.constant 0 : i32
    %12 = arith.cmpi eq, %arg0, %c0_i32_8 : i32
    %13 = arith.extui %12 : i1 to i32
    %c0_i32_9 = arith.constant 0 : i32
    %14 = arith.cmpi ne, %13, %c0_i32_9 : i32
    scf.if %14 {
      %c0_10 = arith.constant 0 : index
      %c0_11 = arith.constant 0 : index
      %15 = vector.load %arg4[%c0_10, %c0_11] : memref<1x128xf32, #tpu.memory_space<vmem>>, vector<1x128xf32>
      %16 = vector.shape_cast %15 : vector<1x128xf32> to vector<1x1x128xf32>
      %c0_12 = arith.constant 0 : index
      %c0_13 = arith.constant 0 : index
      %c0_14 = arith.constant 0 : index
      %17 = vector.load %arg3[%c0_12, %c0_13, %c0_14] : memref<1x1x128xf32, #tpu.memory_space<vmem>>, vector<1x1x128xf32>
      tpu.vector_store %arg3[%c0_12, %c0_13, %c0_14], %16 {strides = array<i32>} : memref<1x1x128xf32, #tpu.memory_space<vmem>>, vector<1x1x128xf32>,
    } else {
    }
    return
  }
  func.func @transform_0(%arg0: i32) -> (i32, i32) {
    %c0_i32 = arith.constant 0 : i32
    %c0_i32_0 = arith.constant 0 : i32
    return %arg0, %c0_i32 : i32, i32
  }
  func.func @transform_1(%arg0: i32) -> (i32, i32) {
    %c0_i32 = arith.constant 0 : i32
    %c0_i32_0 = arith.constant 0 : i32
    return %arg0, %c0_i32 : i32, i32
  }
  func.func @transform_2(%arg0: i32) -> (i32, i32, i32) {
    %c0_i32 = arith.constant 0 : i32
    %c0_i32_0 = arith.constant 0 : i32
    %c0_i32_1 = arith.constant 0 : i32
    %c0_i32_2 = arith.constant 0 : i32
    return %c0_i32, %c0_i32_0, %c0_i32_1 : i32, i32, i32
  }
}

</mosaic_0001>

<llo_original>
// kernel: tpu_custom_call.1
$region0: #{tpu_custom_call.1}
  #allocation0 [shape = 'u32[]', space=smem, size = 0x4, offset = 0x4, fixed_abs, tag = 'smem constant byte address 0x4 - core index']
  #allocation1 [shape = 'u32[144,128]{1,0:T(1,128)}', space=vmem, size = 0x12000, scoped, tag = 'internal scratch']
  #allocation2 [shape = 'f32[1,128]{1,0:T(1,128)}', space=vmem, size = 0x200, scoped, tag = 'scratch operand']
  %s0 = inlined_call_operand.hbm [shape: f32[16,128], index: 0, kind: input, shape index: {}]
  %s1 = inlined_call_operand.hbm [shape: f32[16,128], index: 1, kind: input, shape index: {}]
  %s2 = inlined_call_operand.hbm [shape: f32[1,1,128], index: 2, kind: output, shape index: {}]
  %s3 = sld [smem:[#allocation0]]
  $region34: #{tpu_custom_call.1} parent=0
    _
  %s5 = ssub.s32 1, %s3
  %s6 = scalar_select 0, %s5, %s3
  $region1: #{tpu_custom_call.1} parent=0
    #allocation3 [shape = 'u8[8192]{0}', space=vmem, size = 0x2000, scoped, tag = 'input window, operand 0, single buffered']
    #allocation4 [shape = 's32[1]{0}', space=sflag, size = 0x4, scoped, tag = 'scoped memory for tpu_custom_call.1']
    #allocation5 [shape = 's32[1]{0}', space=sflag, size = 0x4, scoped, tag = 'scoped memory for tpu_custom_call.1']
    #allocation6 [shape = 'u8[8192]{0}', space=vmem, size = 0x2000, scoped, tag = 'input window, operand 1, single buffered']
    #allocation7 [shape = 's32[1]{0}', space=sflag, size = 0x4, scoped, tag = 'scoped memory for tpu_custom_call.1']
    #allocation8 [shape = 'u8[512]{0}', space=vmem, size = 0x400, scoped, tag = 'output window, operand 0, single buffered']
    %7 = vsyncpa [#allocation4], 0
    %8 = vsyncpa [#allocation7], 0
    %9 = vsyncpa [#allocation5], 0
    // Predicated region
    $region2: #{tpu_custom_call.1} parent=1 // pred_check
      _
    $region3: #{tpu_custom_call.1} parent=1 // pred_check_branch
      %11 = sbr.rel (0) target = $region5
    $region4: #{tpu_custom_call.1} parent=1 // pred_region
      %s13 = ssub.s32 256, 256
      %14 = vsyncadd [#allocation4], %s13
      %s15 = sshll.u32 [#allocation3], 4
      %s16 = int_to_ptr.vmem [resolvable:$true] %s15
      %21 = dma.hbm_to_vmem [thread:$0]  %s0, 256, %s16, [#allocation4], 128, 128, 8
    $region5: #{tpu_custom_call.1} parent=1 // pred_fallthru
      _
    // Predicated region
    $region6: #{tpu_custom_call.1} parent=1 // pred_check
      _
    $region7: #{tpu_custom_call.1} parent=1 // pred_check_branch
      %23 = sbr.rel (0) target = $region9
    $region8: #{tpu_custom_call.1} parent=1 // pred_region
      %s25 = ssub.s32 256, 256
      %26 = vsyncadd [#allocation7], %s25
      %s27 = sshll.u32 [#allocation6], 4
      %s28 = int_to_ptr.vmem [resolvable:$true] %s27
      %33 = dma.hbm_to_vmem [thread:$0]  %s1, 256, %s28, [#allocation7], 128, 128, 8
    $region9: #{tpu_custom_call.1} parent=1 // pred_fallthru
      _
    // Predicated region
    $region10: #{tpu_custom_call.1} parent=1 // pred_check
      _
    $region11: #{tpu_custom_call.1} parent=1 // pred_check_branch
      %35 = sbr.rel (0) target = $region13
    $region12: #{tpu_custom_call.1} parent=1 // pred_region
      %36 = dma.done [#allocation4], 256
    $region13: #{tpu_custom_call.1} parent=1 // pred_fallthru
      _
    // Predicated region
    $region14: #{tpu_custom_call.1} parent=1 // pred_check
      _
    $region15: #{tpu_custom_call.1} parent=1 // pred_check_branch
      %38 = sbr.rel (0) target = $region17
    $region16: #{tpu_custom_call.1} parent=1 // pred_region
      %39 = dma.done [#allocation7], 256
    $region17: #{tpu_custom_call.1} parent=1 // pred_fallthru
      _
    %p40 = scmp.eq.s32.totalorder 0, 0
    // Predicated region
    $region18: #{tpu_custom_call.1} parent=1 // pred_check
      %p41 = pneg %p40
    $region19: #{tpu_custom_call.1} parent=1 // pred_check_branch
      %43 = sbr.rel (%p41) target = $region21
    $region20: #{tpu_custom_call.1} parent=1 // pred_region
      %44 = vst [vmem:[#allocation2] sm:$0x1] 0.0
    $region21: #{tpu_custom_call.1} parent=1 // pred_fallthru
      _
    %v45 = vld [vmem:[#allocation2] sm:$0x1]
    %v46 = vld [vmem:[#allocation3] sm:$0xff]
    %v47 = vld [vmem:[#allocation3 + $0x8] sm:$0xff]
    %v48 = vld [vmem:[#allocation6] sm:$0xff]
    %v49 = vld [vmem:[#allocation6 + $0x8] sm:$0xff]
    %v50 = vsub.f32 %v46, %v48
    %v51 = vsub.f32 %v47, %v49
    %v52 = vmul.f32 %v50, %v50
    %v53 = vmul.f32 %v51, %v51
    %v54 = vadd.f32 %v52, %v53
    %v55 = vrot.slane %v54, 4
    %v56 = vadd.f32 %v54, %v55
    %v57 = vrot.slane %v56, 2
    %v58 = vadd.f32 %v56, %v57
    %v59 = vrot.slane %v58, 1
    %v60 = vadd.f32 %v58, %v59
    %v61 = vadd.f32 %v45, %v60
    %62 = vst [vmem:[#allocation2] sm:$0x1] %v61
    // Predicated region
    $region22: #{tpu_custom_call.1} parent=1 // pred_check
      %p63 = pneg %p40
    $region23: #{tpu_custom_call.1} parent=1 // pred_check_branch
      %65 = sbr.rel (%p63) target = $region25
    $region24: #{tpu_custom_call.1} parent=1 // pred_region
      %v66 = vld [vmem:[#allocation2] sm:$0x1]
      %67 = vst [vmem:[#allocation8] sm:$0x1] %v66
    $region25: #{tpu_custom_call.1} parent=1 // pred_fallthru
      _
    // Predicated region
    $region26: #{tpu_custom_call.1} parent=1 // pred_check
      _
    $region27: #{tpu_custom_call.1} parent=1 // pred_check_branch
      %69 = sbr.rel (0) target = $region29
    $region28: #{tpu_custom_call.1} parent=1 // pred_region
      %s71 = ssub.s32 16, 16
      %72 = vsyncadd [#allocation5], %s71
      %s74 = sshll.u32 [#allocation8], 4
      %s75 = int_to_ptr.vmem [resolvable:$true] %s74
      %77 = dma.vmem_to_hbm [thread:$0]  %s75, 16, %s2, [#allocation5]
    $region29: #{tpu_custom_call.1} parent=1 // pred_fallthru
      _
    // Predicated region
    $region30: #{tpu_custom_call.1} parent=1 // pred_check
      _
    $region31: #{tpu_custom_call.1} parent=1 // pred_check_branch
      %79 = sbr.rel (0) target = $region33
    $region32: #{tpu_custom_call.1} parent=1 // pred_region
      %80 = dma.done [#allocation5], 16
    $region33: #{tpu_custom_call.1} parent=1 // pred_fallthru
      _
    %81 = vsyncpa [#allocation4], 1
    %82 = vsyncpa [#allocation7], 1
    %83 = vsyncpa [#allocation5], 1

</llo_original>
